<compile_context>
chip_gen: v6e
topology: v6e:2x2x1
jax: 0.10.0
libtpu: 0.0.40
codegen_flags: <defaults>
</compile_context>

<pallas_src>
import functools

import jax
import jax.numpy as jnp
from jax.experimental import pallas as pl
from jax.experimental.pallas import tpu as pltpu


# ----------------------------------------------------------------------------
# Kernels
# ----------------------------------------------------------------------------
def _stage1_kernel(x_ref, w_ref, b_ref, o_ref, *, k, dilation, padding):
    """Fused causal dilated conv + bias + ReLU (conv1 + chomp1 + relu1).

    x_ref : (1, C_in,  L + padding)  left-padded input slab, one batch element
    w_ref : (k, C_out, C_in)         tap-major weight-normalized weights
    b_ref : (C_out, 1)
    o_ref : (1, C_out, L + padding)  output, emitted WITH the next stage's
                                     causal left padding already in place
    """
    lp = o_ref.shape[-1]
    l_out = lp - padding
    c_out = o_ref.shape[1]

    x = x_ref[0]                                            # (C_in, L + padding)
    acc = jnp.zeros((c_out, l_out), jnp.float32)
    for j in range(k):                                      # k is tiny & static
        start = j * dilation
        acc += jnp.dot(w_ref[j], x[:, start:start + l_out],
                       preferred_element_type=jnp.float32)
    h = jnp.maximum(acc + b_ref[...], 0.0).astype(o_ref.dtype)

    # TODO(synk): nn.Dropout is identity at inference; training-mode dropout
    # (pltpu.prng_*) is not implemented here.
    o_ref[0, :, :padding] = jnp.zeros((c_out, padding), o_ref.dtype)
    o_ref[0, :, padding:] = h


def _stage2_kernel(h_ref, x_ref, w_ref, b_ref, *rest,
                   k, dilation, padding, has_downsample):
    """Fused conv2 + chomp2 + relu2 + (optional 1x1 downsample) + residual + ReLU.

    h_ref : (1, C_mid, L + padding)  left-padded stage-1 output
    x_ref : (1, C_in,  L + padding)  left-padded original input (residual path)
    w_ref : (k, C_out, C_mid)
    b_ref : (C_out, 1)
    rest  : (wd_ref (C_out, C_in), bd_ref (C_out, 1), o_ref) if has_downsample
            else (o_ref,)
    o_ref : (1, C_out, L)
    """
    if has_downsample:
        wd_ref, bd_ref, o_ref = rest
    else:
        (o_ref,) = rest

    l_out = o_ref.shape[-1]
    c_out = o_ref.shape[1]

    h = h_ref[0]                                            # (C_mid, L + padding)
    acc = jnp.zeros((c_out, l_out), jnp.float32)
    for j in range(k):
        start = j * dilation
        acc += jnp.dot(w_ref[j], h[:, start:start + l_out],
                       preferred_element_type=jnp.float32)
    out = jnp.maximum(acc + b_ref[...], 0.0)                # relu2 (dropout2 = id)

    x_full = x_ref[0]                                       # (C_in, L + padding)
    x_tail = x_full[:, padding:]                            # original (unpadded) x
    if has_downsample:
        res = jnp.dot(wd_ref[...], x_tail,
                      preferred_element_type=jnp.float32) + bd_ref[...]
    else:
        res = x_tail.astype(jnp.float32)

    o_ref[0] = jnp.maximum(out + res, 0.0).astype(o_ref.dtype)


# ----------------------------------------------------------------------------
# pallas_call wrappers
# ----------------------------------------------------------------------------
def _causal_conv_stage1(x_pad, w, b, *, k, dilation, padding):
    n, c_in, lp = x_pad.shape
    c_out = w.shape[1]
    return pl.pallas_call(
        functools.partial(_stage1_kernel, k=k, dilation=dilation, padding=padding),
        out_shape=jax.ShapeDtypeStruct((n, c_out, lp), x_pad.dtype),
        grid_spec=pltpu.PrefetchScalarGridSpec(
            num_scalar_prefetch=0,
            grid=(n,),
            in_specs=[
                pl.BlockSpec((1, c_in, lp), lambda b_: (b_, 0, 0)),
                pl.BlockSpec((k, c_out, c_in), lambda b_: (0, 0, 0)),
                pl.BlockSpec((c_out, 1), lambda b_: (0, 0)),
            ],
            out_specs=pl.BlockSpec((1, c_out, lp), lambda b_: (b_, 0, 0)),
        ),
        compiler_params=pltpu.CompilerParams(dimension_semantics=("parallel",)),
    )(x_pad, w, b)


def _causal_conv_stage2(h_pad, x_pad, w, b, wd, bd, *, k, dilation, padding):
    n, c_mid, lp = h_pad.shape
    c_in = x_pad.shape[1]
    c_out = w.shape[1]
    l_out = lp - padding
    has_downsample = wd is not None

    in_specs = [
        pl.BlockSpec((1, c_mid, lp), lambda b_: (b_, 0, 0)),
        pl.BlockSpec((1, c_in, lp), lambda b_: (b_, 0, 0)),
        pl.BlockSpec((k, c_out, c_mid), lambda b_: (0, 0, 0)),
        pl.BlockSpec((c_out, 1), lambda b_: (0, 0)),
    ]
    args = [h_pad, x_pad, w, b]
    if has_downsample:
        in_specs += [
            pl.BlockSpec((c_out, c_in), lambda b_: (0, 0)),
            pl.BlockSpec((c_out, 1), lambda b_: (0, 0)),
        ]
        args += [wd, bd]

    return pl.pallas_call(
        functools.partial(_stage2_kernel, k=k, dilation=dilation,
                          padding=padding, has_downsample=has_downsample),
        out_shape=jax.ShapeDtypeStruct((n, c_out, l_out), h_pad.dtype),
        grid_spec=pltpu.PrefetchScalarGridSpec(
            num_scalar_prefetch=0,
            grid=(n,),
            in_specs=in_specs,
            out_specs=pl.BlockSpec((1, c_out, l_out), lambda b_: (b_, 0, 0)),
        ),
        compiler_params=pltpu.CompilerParams(dimension_semantics=("parallel",)),
    )(*args)


# ----------------------------------------------------------------------------
# TemporalBlock forward
# ----------------------------------------------------------------------------
def weight_norm_weight(v, g):
    """PyTorch weight_norm(dim=0): w = g * v / ||v||, per output channel."""
    norm = jnp.sqrt(jnp.sum(v.astype(jnp.float32) ** 2, axis=(1, 2), keepdims=True))
    return (g[:, None, None] * v / norm).astype(v.dtype)


def temporal_block(x, params, *, kernel_size, stride, dilation, padding):
    """Forward of TemporalBlock (eval mode). x: (N, C_in, L)."""
    # TODO(synk): stride != 1 changes the conv/chomp length algebra; not supported.
    assert stride == 1
    assert padding > 0
    # The residual add `out + res` in the original module only type-checks when
    # the conv output (after chomp) has length L, i.e. padding == (k-1)*dilation.
    assert padding == dilation * (kernel_size - 1)

    n, c_in, l = x.shape
    w1 = weight_norm_weight(params["v1"], params["g1"])     # (C_out, C_in, k)
    w2 = weight_norm_weight(params["v2"], params["g2"])     # (C_out, C_out, k)
    c_out = w1.shape[0]

    # Tap-major weights: each tap is a clean (C_out, C_in) VMEM slab.
    w1_t = jnp.transpose(w1, (2, 0, 1))
    w2_t = jnp.transpose(w2, (2, 0, 1))
    b1c = params["b1"].reshape(c_out, 1)
    b2c = params["b2"].reshape(c_out, 1)

    # Single causal left pad of the network input. This replaces BOTH Conv1d
    # symmetric pads and BOTH Chomp1d slices (no chomp kernel, no sliced
    # intermediate in HBM).
    x_pad = jnp.pad(x, ((0, 0), (0, 0), (padding, 0)))

    h1_pad = _causal_conv_stage1(x_pad, w1_t, b1c,
                                 k=kernel_size, dilation=dilation, padding=padding)

    if c_in != c_out:
        wd = params["wd"].reshape(c_out, c_in)              # from (C_out, C_in, 1)
        bd = params["bd"].reshape(c_out, 1)
    else:
        wd = bd = None

    return _causal_conv_stage2(h1_pad, x_pad, w2_t, b2c, wd, bd,
                               k=kernel_size, dilation=dilation, padding=padding)


# ----------------------------------------------------------------------------
# Plain-JAX reference (mirrors the PyTorch module exactly)
# ----------------------------------------------------------------------------
def temporal_block_ref(x, params, *, kernel_size, dilation, padding):
    hp = jax.lax.Precision.HIGHEST
    w1 = weight_norm_weight(params["v1"], params["g1"])
    w2 = weight_norm_weight(params["v2"], params["g2"])

    def conv(z, w, b):
        y = jax.lax.conv_general_dilated(
            z, w, window_strides=(1,), padding=[(padding, padding)],
            rhs_dilation=(dilation,),
            dimension_numbers=("NCH", "OIH", "NCH"), precision=hp)
        return y + b[None, :, None]

    h = conv(x, w1, params["b1"])[:, :, :-padding]          # chomp1
    h = jnp.maximum(h, 0.0)                                 # relu1 (dropout1 = id)
    o = conv(h, w2, params["b2"])[:, :, :-padding]          # chomp2
    o = jnp.maximum(o, 0.0)                                 # relu2 (dropout2 = id)
    if "wd" in params:
        res = jnp.einsum("oi,nil->nol", params["wd"][:, :, 0], x,
                         precision=hp) + params["bd"][None, :, None]
    else:
        res = x
    return jnp.maximum(o + res, 0.0)


# ----------------------------------------------------------------------------
# Self-test
# ----------------------------------------------------------------------------
if __name__ == "__main__":
    def run_case(n, c_in, c_out, l, kernel_size, dilation, key):
        padding = (kernel_size - 1) * dilation
        ks = jax.random.split(key, 8)
        x = jax.random.normal(ks[0], (n, c_in, l), jnp.float32)
        v1 = 0.01 * jax.random.normal(ks[1], (c_out, c_in, kernel_size), jnp.float32)
        g1 = jnp.sqrt(jnp.sum(v1 * v1, axis=(1, 2)))        # PyTorch init: g = ||v||
        b1 = 0.1 * jax.random.normal(ks[2], (c_out,), jnp.float32)
        v2 = 0.01 * jax.random.normal(ks[3], (c_out, c_out, kernel_size), jnp.float32)
        g2 = jnp.sqrt(jnp.sum(v2 * v2, axis=(1, 2)))
        b2 = 0.1 * jax.random.normal(ks[4], (c_out,), jnp.float32)
        params = dict(v1=v1, g1=g1, b1=b1, v2=v2, g2=g2, b2=b2)
        if c_in != c_out:
            params["wd"] = 0.01 * jax.random.normal(ks[5], (c_out, c_in, 1), jnp.float32)
            params["bd"] = 0.1 * jax.random.normal(ks[6], (c_out,), jnp.float32)

        y = temporal_block(x, params, kernel_size=kernel_size, stride=1,
                           dilation=dilation, padding=padding)
        y = jax.block_until_ready(y)

        y_ref = temporal_block_ref(x, params, kernel_size=kernel_size,
                                   dilation=dilation, padding=padding)
        assert y.shape == (n, c_out, l), (y.shape, (n, c_out, l))
        err = float(jnp.max(jnp.abs(y - y_ref)))
        assert jnp.allclose(y, y_ref, atol=1e-3, rtol=1e-3), err

    # Case 1: n_inputs != n_outputs -> 1x1 downsample residual path, dilation 2.
    run_case(n=2, c_in=4, c_out=8, l=16, kernel_size=3, dilation=2,
             key=jax.random.PRNGKey(0))
    # Case 2: n_inputs == n_outputs -> identity residual path.
    run_case(n=2, c_in=8, c_out=8, l=16, kernel_size=2, dilation=1,
             key=jax.random.PRNGKey(1))

    print("KERNEL_OK")
</pallas_src>

<mosaic_0001>
module attributes {stable_mosaic.version = 11 : i64} {
  func.func @_stage1_kernel(%arg0: i32, %arg1: memref<1x4x20xf32, #tpu.memory_space<vmem>>, %arg2: memref<3x8x4xf32, #tpu.memory_space<vmem>>, %arg3: memref<8x1xf32, #tpu.memory_space<vmem>>, %arg4: memref<1x8x20xf32, #tpu.memory_space<vmem>>) attributes {dimension_semantics = [#tpu.dimension_semantics<parallel>], iteration_bounds = array<i64: 2>, scalar_prefetch = 0 : i64, scratch_operands = 0 : i64, tpu.core_type = #tpu.core_type<tc>, window_params = [{transform_indices = @transform_0, window_bounds = array<i64: 1, 4, 20>}, {pipeline_mode = #tpu.pipeline_mode<synchronous>, transform_indices = @transform_1, window_bounds = array<i64: 3, 8, 4>}, {pipeline_mode = #tpu.pipeline_mode<synchronous>, transform_indices = @transform_2, window_bounds = array<i64: 8, 1>}, {transform_indices = @transform_3, window_bounds = array<i64: 1, 8, 20>}]} {
    %c0 = arith.constant 0 : index
    %c0_0 = arith.constant 0 : index
    %c0_1 = arith.constant 0 : index
    %0 = vector.load %arg1[%c0, %c0_0, %c0_1] : memref<1x4x20xf32, #tpu.memory_space<vmem>>, vector<1x4x20xf32>
    %1 = vector.shape_cast %0 : vector<1x4x20xf32> to vector<4x20xf32>
    %cst = arith.constant 0.000000e+00 : f32
    %2 = vector.broadcast %cst : f32 to vector<8x16xf32>
    %c0_2 = arith.constant 0 : index
    %c0_3 = arith.constant 0 : index
    %c0_4 = arith.constant 0 : index
    %3 = vector.load %arg2[%c0_2, %c0_3, %c0_4] : memref<3x8x4xf32, #tpu.memory_space<vmem>>, vector<1x8x4xf32>
    %4 = vector.shape_cast %3 : vector<1x8x4xf32> to vector<8x4xf32>
    %5 = vector.extract_strided_slice %1 {offsets = [0, 0], sizes = [4, 16], strides = [1, 1]} : vector<4x20xf32> to vector<4x16xf32>
    %cst_5 = arith.constant dense<0.000000e+00> : vector<8x16xf32>
    %6 = tpu.matmul %4, %5, %cst_5 {dimension_numbers = #tpu.dot_dimension_numbers<[1], [0], [0], [1], [0, 0, 1, 1], [], []>} : vector<8x4xf32>, vector<4x16xf32>, vector<8x16xf32> -> vector<8x16xf32>
    %7 = arith.addf %2, %6 : vector<8x16xf32>
    %c1 = arith.constant 1 : index
    %c0_6 = arith.constant 0 : index
    %c0_7 = arith.constant 0 : index
    %8 = vector.load %arg2[%c1, %c0_6, %c0_7] : memref<3x8x4xf32, #tpu.memory_space<vmem>>, vector<1x8x4xf32>
    %9 = vector.shape_cast %8 : vector<1x8x4xf32> to vector<8x4xf32>
    %10 = vector.extract_strided_slice %1 {offsets = [0, 2], sizes = [4, 16], strides = [1, 1]} : vector<4x20xf32> to vector<4x16xf32>
    %cst_8 = arith.constant dense<0.000000e+00> : vector<8x16xf32>
    %11 = tpu.matmul %9, %10, %cst_8 {dimension_numbers = #tpu.dot_dimension_numbers<[1], [0], [0], [1], [0, 0, 1, 1], [], []>} : vector<8x4xf32>, vector<4x16xf32>, vector<8x16xf32> -> vector<8x16xf32>
    %12 = arith.addf %7, %11 : vector<8x16xf32>
    %c2 = arith.constant 2 : index
    %c0_9 = arith.constant 0 : index
    %c0_10 = arith.constant 0 : index
    %13 = vector.load %arg2[%c2, %c0_9, %c0_10] : memref<3x8x4xf32, #tpu.memory_space<vmem>>, vector<1x8x4xf32>
    %14 = vector.shape_cast %13 : vector<1x8x4xf32> to vector<8x4xf32>
    %15 = vector.extract_strided_slice %1 {offsets = [0, 4], sizes = [4, 16], strides = [1, 1]} : vector<4x20xf32> to vector<4x16xf32>
    %cst_11 = arith.constant dense<0.000000e+00> : vector<8x16xf32>
    %16 = tpu.matmul %14, %15, %cst_11 {dimension_numbers = #tpu.dot_dimension_numbers<[1], [0], [0], [1], [0, 0, 1, 1], [], []>} : vector<8x4xf32>, vector<4x16xf32>, vector<8x16xf32> -> vector<8x16xf32>
    %17 = arith.addf %12, %16 : vector<8x16xf32>
    %c0_12 = arith.constant 0 : index
    %c0_13 = arith.constant 0 : index
    %18 = vector.load %arg3[%c0_12, %c0_13] : memref<8x1xf32, #tpu.memory_space<vmem>>, vector<8x1xf32>
    %19 = vector.broadcast %18 : vector<8x1xf32> to vector<8x16xf32>
    %20 = arith.addf %17, %19 : vector<8x16xf32>
    %cst_14 = arith.constant 0.000000e+00 : f32
    %21 = vector.broadcast %cst_14 : f32 to vector<8x16xf32>
    %22 = arith.maximumf %20, %21 : vector<8x16xf32>
    %cst_15 = arith.constant 0.000000e+00 : f32
    %23 = vector.broadcast %cst_15 : f32 to vector<8x4xf32>
    %c0_16 = arith.constant 0 : index
    %c0_17 = arith.constant 0 : index
    %c0_18 = arith.constant 0 : index
    %24 = vector.load %arg4[%c0_16, %c0_17, %c0_18] : memref<1x8x20xf32, #tpu.memory_space<vmem>>, vector<1x8x4xf32>
    %25 = vector.shape_cast %24 : vector<1x8x4xf32> to vector<8x4xf32>
    %26 = vector.shape_cast %23 : vector<8x4xf32> to vector<1x8x4xf32>
    tpu.vector_store %arg4[%c0_16, %c0_17, %c0_18], %26 {strides = array<i32>} : memref<1x8x20xf32, #tpu.memory_space<vmem>>, vector<1x8x4xf32>,
    %c0_19 = arith.constant 0 : index
    %c0_20 = arith.constant 0 : index
    %c4 = arith.constant 4 : index
    %27 = vector.load %arg4[%c0_19, %c0_20, %c4] : memref<1x8x20xf32, #tpu.memory_space<vmem>>, vector<1x8x16xf32>
    %28 = vector.shape_cast %27 : vector<1x8x16xf32> to vector<8x16xf32>
    %29 = vector.shape_cast %22 : vector<8x16xf32> to vector<1x8x16xf32>
    tpu.vector_store %arg4[%c0_19, %c0_20, %c4], %29 {strides = array<i32>} : memref<1x8x20xf32, #tpu.memory_space<vmem>>, vector<1x8x16xf32>,
    return
  }
  func.func @transform_0(%arg0: i32) -> (i32, i32, i32) {
    %c0_i32 = arith.constant 0 : i32
    %c0_i32_0 = arith.constant 0 : i32
    %c0_i32_1 = arith.constant 0 : i32
    return %arg0, %c0_i32, %c0_i32_0 : i32, i32, i32
  }
  func.func @transform_1(%arg0: i32) -> (i32, i32, i32) {
    %c0_i32 = arith.constant 0 : i32
    %c0_i32_0 = arith.constant 0 : i32
    %c0_i32_1 = arith.constant 0 : i32
    %c0_i32_2 = arith.constant 0 : i32
    return %c0_i32, %c0_i32_0, %c0_i32_1 : i32, i32, i32
  }
  func.func @transform_2(%arg0: i32) -> (i32, i32) {
    %c0_i32 = arith.constant 0 : i32
    %c0_i32_0 = arith.constant 0 : i32
    %c0_i32_1 = arith.constant 0 : i32
    return %c0_i32, %c0_i32_0 : i32, i32
  }
  func.func @transform_3(%arg0: i32) -> (i32, i32, i32) {
    %c0_i32 = arith.constant 0 : i32
    %c0_i32_0 = arith.constant 0 : i32
    %c0_i32_1 = arith.constant 0 : i32
    return %arg0, %c0_i32, %c0_i32_0 : i32, i32, i32
  }
}

</mosaic_0001>

<llo_original>
// kernel: tpu_custom_call.1
$region0: #{tpu_custom_call.1}
  #allocation0 [shape = 'u32[]', space=smem, size = 0x4, offset = 0x4, fixed_abs, tag = 'smem constant byte address 0x4 - core index']
  #allocation1 [shape = 'u32[144,128]{1,0:T(1,128)}', space=vmem, size = 0x12000, scoped, tag = 'internal scratch']
  %s0 = inlined_call_operand.vmem [shape: f32[2,4,20], index: 0, kind: input, shape index: {}]
  %s1 = inlined_call_operand.vmem [shape: f32[3,8,4], index: 1, kind: input, shape index: {}]
  %s2 = inlined_call_operand.vmem [shape: f32[8,1], index: 2, kind: input, shape index: {}]
  %s3 = inlined_call_operand.hbm [shape: f32[2,8,20], index: 3, kind: output, shape index: {}]
  %s4 = sld [smem:[#allocation0]]
  $region45: #{tpu_custom_call.1} parent=0
    _
  %s6 = ssub.s32 1, %s4
  %s7 = scalar_select 0, %s6, %s4
  $region1: #{tpu_custom_call.1} parent=0
    #allocation2 [shape = 'u8[8192]{0}', space=vmem, size = 0x2000, scoped, tag = 'output window, operand 0']
    #allocation3 [shape = 's32[2]{0}', space=sflag, size = 0x8, scoped, tag = 'scoped memory for tpu_custom_call.1']
    %8 = vsyncpa [#allocation3], 0
    %s9 = scalar_lea.sflag [#allocation3], 1
    %10 = vsyncpa %s9, 0
    loop: start=0, step=1, limit=4
    $region2: #{tpu_custom_call.1} parent=1 // loop_pre_header
      _
    $region3: #{tpu_custom_call.1} parent=1 // loop_header
      %s12 = sphi 0, %s16
      %p13 = scmp.ge.s32.totalorder %s12, 4
      %s22 = sphi 0, %s24
      %s25 = sphi 0, %s22
      %s26 = sphi 0, %s25
      %s42 = sphi 0, %s26
      %s46 = sphi 0, %s46
      %s48 = sphi 0, %s46
      %s49 = sphi 0, %s48
      %s63 = sphi 0, %s49
      %s67 = sphi 0, %s67
      %s69 = sphi 0, %s67
      %s70 = sphi 0, %s69
      %s84 = sphi 0, %s70
      %s90 = sphi 0, %s92
      %s93 = sphi 0, %s90
      %s94 = sphi 0, %s93
      %s110 = sphi 0, %s94
    $region4: #{tpu_custom_call.1} parent=1 // loop_header_branch
      %15 = sbr.rel (%p13) target = $region8
    $region5: #{tpu_custom_call.1} parent=1 // loop_body
      %s17 = ssub.s32 %s12, 1
      %s18 = ssub.s32 %s12, 2
      %s19 = sadd.s32 %s12, 1
      %s20 = ssub.s32 %s12, %s19
      %p21 = scmp.eq.s32.totalorder %s20, 0
      %s23 = sadd.s32 %s22, 1
      %s24 = scalar_select %p21, %s22, %s23
      %p27 = pneg %p21
      %p28 = scmp.eq.s32.totalorder %s12, 1
      %p29 = por %p27, %p28
      %p30 = scmp.ne.s32.totalorder %s22, %s25
      %p31 = scmp.eq.s32.totalorder %s12, 0
      %p32 = por %p30, %p31
      %p33 = scmp.ne.s32.totalorder %s22, %s25
      %p34 = scmp.eq.s32.totalorder %s17, 1
      %p35 = por %p33, %p34
      %p36 = scmp.ne.s32.totalorder %s25, %s26
      %p37 = scmp.eq.s32.totalorder %s17, 0
      %p38 = por %p36, %p37
      %p39 = scmp.ne.s32.totalorder %s25, %s26
      %p40 = scmp.eq.s32.totalorder %s18, 1
      %p41 = por %p39, %p40
      %p43 = scmp.ne.s32.totalorder %s26, %s42
      %p44 = scmp.eq.s32.totalorder %s18, 0
      %p45 = por %p43, %p44
      %s47 = sadd.s32 %s46, 1
      %p50 = scmp.eq.s32.totalorder %s12, 1
      %p51 = scmp.ne.s32.totalorder %s46, %s48
      %p52 = scmp.eq.s32.totalorder %s12, 0
      %p53 = por %p51, %p52
      %p54 = scmp.ne.s32.totalorder %s46, %s48
      %p55 = scmp.eq.s32.totalorder %s17, 1
      %p56 = por %p54, %p55
      %p57 = scmp.ne.s32.totalorder %s48, %s49
      %p58 = scmp.eq.s32.totalorder %s17, 0
      %p59 = por %p57, %p58
      %p60 = scmp.ne.s32.totalorder %s48, %s49
      %p61 = scmp.eq.s32.totalorder %s18, 1
      %p62 = por %p60, %p61
      %p64 = scmp.ne.s32.totalorder %s49, %s63
      %p65 = scmp.eq.s32.totalorder %s18, 0
      %p66 = por %p64, %p65
      %s68 = sadd.s32 %s67, 1
      %p71 = scmp.eq.s32.totalorder %s12, 1
      %p72 = scmp.ne.s32.totalorder %s67, %s69
      %p73 = scmp.eq.s32.totalorder %s12, 0
      %p74 = por %p72, %p73
      %p75 = scmp.ne.s32.totalorder %s67, %s69
      %p76 = scmp.eq.s32.totalorder %s17, 1
      %p77 = por %p75, %p76
      %p78 = scmp.ne.s32.totalorder %s69, %s70
      %p79 = scmp.eq.s32.totalorder %s17, 0
      %p80 = por %p78, %p79
      %p81 = scmp.ne.s32.totalorder %s69, %s70
      %p82 = scmp.eq.s32.totalorder %s18, 1
      %p83 = por %p81, %p82
      %p85 = scmp.ne.s32.totalorder %s70, %s84
      %p86 = scmp.eq.s32.totalorder %s18, 0
      %p87 = por %p85, %p86
      %s88 = ssub.s32 %s12, %s19
      %p89 = scmp.eq.s32.totalorder %s88, 0
      %s91 = sadd.s32 %s90, 1
      %s92 = scalar_select %p89, %s90, %s91
      %p95 = pneg %p89
      %p96 = scmp.eq.s32.totalorder %s12, 1
      %p97 = por %p95, %p96
      %p98 = scmp.ne.s32.totalorder %s90, %s93
      %p99 = scmp.eq.s32.totalorder %s12, 0
      %p100 = por %p98, %p99
      %p101 = scmp.ne.s32.totalorder %s90, %s93
      %p102 = scmp.eq.s32.totalorder %s17, 1
      %p103 = por %p101, %p102
      %p104 = scmp.ne.s32.totalorder %s93, %s94
      %p105 = scmp.eq.s32.totalorder %s17, 0
      %p106 = por %p104, %p105
      %p107 = scmp.ne.s32.totalorder %s93, %s94
      %p108 = scmp.eq.s32.totalorder %s18, 1
      %p109 = por %p107, %p108
      %p111 = scmp.ne.s32.totalorder %s94, %s110
      %p112 = scmp.eq.s32.totalorder %s18, 0
      %p113 = por %p111, %p112
      %p114 = scmp.le.s32.totalorder 1, %s12
      %p115 = scmp.lt.s32.totalorder %s12, 3
      %p116 = pnand %p114, %p115
      %p117 = pneg %p116
      // Predicated region
      $region9: #{tpu_custom_call.1} parent=5 // pred_check
        _
      $region10: #{tpu_custom_call.1} parent=5 // pred_check_branch
        %119 = sbr.rel (%p116) target = $region12
      $region11: #{tpu_custom_call.1} parent=5 // pred_region
        %s120 = ssub.s32 %s12, 1
        // Predicated region
        $region13: #{tpu_custom_call.1} parent=11 // pred_check
          %p121 = pneg %p59
        $region14: #{tpu_custom_call.1} parent=11 // pred_check_branch
          %123 = sbr.rel (%p121) target = $region16
        $region15: #{tpu_custom_call.1} parent=11 // pred_region
          _
        $region16: #{tpu_custom_call.1} parent=11 // pred_fallthru
          _
        // Predicated region
        $region17: #{tpu_custom_call.1} parent=11 // pred_check
          %p124 = pneg %p80
        $region18: #{tpu_custom_call.1} parent=11 // pred_check_branch
          %126 = sbr.rel (%p124) target = $region20
        $region19: #{tpu_custom_call.1} parent=11 // pred_region
          _
        $region20: #{tpu_custom_call.1} parent=11 // pred_fallthru
          _
      $region12: #{tpu_custom_call.1} parent=5 // pred_fallthru
        _
      %p127 = scmp.lt.s32.totalorder %s12, 2
      // Predicated region
      $region21: #{tpu_custom_call.1} parent=5 // pred_check
        %p128 = pneg %p127
      $region22: #{tpu_custom_call.1} parent=5 // pred_check_branch
        %130 = sbr.rel (%p128) target = $region24
      $region23: #{tpu_custom_call.1} parent=5 // pred_region
        // Predicated region
        $region25: #{tpu_custom_call.1} parent=23 // pred_check
          %p131 = pneg %p32
        $region26: #{tpu_custom_call.1} parent=23 // pred_check_branch
          %133 = sbr.rel (%p131) target = $region28
        $region27: #{tpu_custom_call.1} parent=23 // pred_region
          %p134 = scmp.lt.s32.totalorder %s12, 1
          %s135 = scalar_select %p134, %s12, 1
          %s136 = smul.addr %s135, 4
          %s137 = scalar_lea.vmem %s0, %s136
        $region28: #{tpu_custom_call.1} parent=23 // pred_fallthru
          _
      $region24: #{tpu_custom_call.1} parent=5 // pred_fallthru
        _
      %p138 = scmp.le.s32.totalorder 1, %s12
      %p139 = scmp.lt.s32.totalorder %s12, 3
      %p140 = pnand %p138, %p139
      %p141 = pneg %p140
      // Predicated region
      $region29: #{tpu_custom_call.1} parent=5 // pred_check
        _
      $region30: #{tpu_custom_call.1} parent=5 // pred_check_branch
        %143 = sbr.rel (%p140) target = $region32
      $region31: #{tpu_custom_call.1} parent=5 // pred_region
        %s144 = ssub.s32 %s12, 1
        %p145 = scmp.lt.s32.totalorder %s17, 1
        %s146 = scalar_select %p145, %s17, 1
        %s147 = smul.addr %s146, 4
        %s148 = scalar_lea.vmem %s0, %s147
        %p149 = pneg %p38
        %p150 = pneg %p35
        %p151 = pneg %p59
        %p152 = pneg %p56
        %p153 = pneg %p80
        %p154 = pneg %p77
        %p155 = pneg %p106
        %p156 = pneg %p103
        %s157 = sand.u32 %s93, 1
        %s158 = scalar_lea.sflag [#allocation3], %s157
        %s159 = sand.u32 %s93, 1
        %s160 = smul.addr %s159, 8
        %s161 = scalar_lea.vmem [#allocation2], %s160
        %p162 = scmp.lt.s32.totalorder %s17, 1
        %s163 = scalar_select %p162, %s17, 1
        %s164 = smul.addr %s163, 4
        %s165 = scalar_lea.vmem %s0, %s164
        %v166 = vld [vmem:[%s165] sm:$0xf]
        %v167 = vld [vmem:[%s1] sm:$0xff]
        %s168 = scalar_lea.vmem %s1, 8
        %v169 = vld [vmem:[%s168] sm:$0xff]
        %171 = vrot.lane.b32.xlu0 %v166, 126
        %v172 = vpop.permute.xlu0 %171
        %vm173 = vcmask 31744
        %v175 = vsel %vm173, %v169, 0
        %vm177 = vcmask 1043456
        %v178 = vsel %vm177, %v172, 0
        %180 = vmatprep.subr.mxu0 0.0
        %181 = vmatpush1.msra.mxu0 0.0
        %182 = vmatprep.subr.mxu0 0.0
        %183 = vmatpush1.msra.mxu0 0.0
        %184 = vmatprep.subr.mxu0 0.0
        %185 = vmatpush1.msra.mxu0 0.0
        %186 = vmatprep.subr.mxu0 0.0
        %187 = vmatpush1.msra.mxu0 0.0
        %188 = vmatprep.subr.mxu0 0.0
        %189 = vmatpush1.msra.mxu0 0.0
        %190 = vmatprep.subr.mxu0 0.0
        %191 = vmatpush1.msra.mxu0 0.0
        %192 = vmatprep.subr.mxu0 0.0
        %193 = vmatpush1.msra.mxu0 0.0
        %194 = vmatprep.subr.mxu0 0.0
        %195 = vmatpush1.msra.mxu0 0.0
        %196 = vmatprep.subr.mxu0 0.0
        %197 = vmatpush1.msra.mxu0 0.0
        %198 = vmatprep.subr.mxu0 0.0
        %199 = vmatpush1.msra.mxu0 0.0
        %200 = vmatprep.subr.mxu0 0.0
        %201 = vmatpush1.msra.mxu0 0.0
        %202 = vmatprep.subr.mxu0 0.0
        %203 = vmatpush1.msra.mxu0 0.0
        %204 = vmatprep.subr.mxu0 0.0
        %205 = vmatpush1.msra.mxu0 0.0
        %206 = vmatprep.subr.mxu0 0.0
        %207 = vmatpush1.msra.mxu0 0.0
        %208 = vmatprep.subr.mxu0 0.0
        %209 = vmatpush1.msra.mxu0 0.0
        %210 = vmatprep.subr.mxu0 0.0
        %211 = vmatpush1.msra.mxu0 %v178
        %212 = vmatprep.subr.mxu0 0.0
        %213 = vmatpush2.msra.mxu0 0.0
        %214 = vmatprep.subr.mxu0 0.0
        %215 = vmatpush2.msra.mxu0 0.0
        %216 = vmatprep.subr.mxu0 0.0
        %217 = vmatpush2.msra.mxu0 0.0
        %218 = vmatprep.subr.mxu0 0.0
        %219 = vmatpush2.msra.mxu0 0.0
        %220 = vmatprep.subr.mxu0 0.0
        %221 = vmatpush2.msra.mxu0 0.0
        %222 = vmatprep.subr.mxu0 0.0
        %223 = vmatpush2.msra.mxu0 0.0
        %224 = vmatprep.subr.mxu0 0.0
        %225 = vmatpush2.msra.mxu0 0.0
        %226 = vmatprep.subr.mxu0 0.0
        %227 = vmatpush2.msra.mxu0 0.0
        %228 = vmatprep.subr.mxu0 0.0
        %229 = vmatpush2.msra.mxu0 0.0
        %230 = vmatprep.subr.mxu0 0.0
        %231 = vmatpush2.msra.mxu0 0.0
        %232 = vmatprep.subr.mxu0 0.0
        %233 = vmatpush2.msra.mxu0 0.0
        %234 = vmatprep.subr.mxu0 0.0
        %235 = vmatpush2.msra.mxu0 0.0
        %236 = vmatprep.subr.mxu0 0.0
        %237 = vmatpush2.msra.mxu0 0.0
        %238 = vmatprep.subr.mxu0 0.0
        %239 = vmatpush2.msra.mxu0 0.0
        %240 = vmatprep.subr.mxu0 0.0
        %241 = vmatpush2.msra.mxu0 0.0
        %242 = vmatprep.subr.mxu0 0.0
        %243 = vmatpush2.msra.mxu0 0.0
        %244 = vmatprep.mubr.f32.mxu0 0.0
        %245 = vmatmul.mubr.f32.gmra.mxu0 %v175
        %v246 = vpop.f32.mrf.mxu0
        %v247 = vadd.f32 0.0, %v246
        %v248 = vpop.f32.mrf.mxu0
        %249 = vdwg.mxu0
        %v251 = vsel %vm173, %v167, 0
        %v253 = vsel %vm177, %v166, 0
        %255 = vmatprep.subr.mxu0 0.0
        %256 = vmatpush1.msra.mxu0 0.0
        %257 = vmatprep.subr.mxu0 0.0
        %258 = vmatpush1.msra.mxu0 0.0
        %259 = vmatprep.subr.mxu0 0.0
        %260 = vmatpush1.msra.mxu0 0.0
        %261 = vmatprep.subr.mxu0 0.0
        %262 = vmatpush1.msra.mxu0 0.0
        %263 = vmatprep.subr.mxu0 0.0
        %264 = vmatpush1.msra.mxu0 0.0
        %265 = vmatprep.subr.mxu0 0.0
        %266 = vmatpush1.msra.mxu0 0.0
        %267 = vmatprep.subr.mxu0 0.0
        %268 = vmatpush1.msra.mxu0 0.0
        %269 = vmatprep.subr.mxu0 0.0
        %270 = vmatpush1.msra.mxu0 0.0
        %271 = vmatprep.subr.mxu0 0.0
        %272 = vmatpush1.msra.mxu0 0.0
        %273 = vmatprep.subr.mxu0 0.0
        %274 = vmatpush1.msra.mxu0 0.0
        %275 = vmatprep.subr.mxu0 0.0
        %276 = vmatpush1.msra.mxu0 0.0
        %277 = vmatprep.subr.mxu0 0.0
        %278 = vmatpush1.msra.mxu0 0.0
        %279 = vmatprep.subr.mxu0 0.0
        %280 = vmatpush1.msra.mxu0 0.0
        %281 = vmatprep.subr.mxu0 0.0
        %282 = vmatpush1.msra.mxu0 0.0
        %283 = vmatprep.subr.mxu0 0.0
        %284 = vmatpush1.msra.mxu0 0.0
        %285 = vmatprep.subr.mxu0 0.0
        %286 = vmatpush1.msra.mxu0 %v253
        %287 = vmatprep.subr.mxu0 0.0
        %288 = vmatpush2.msra.mxu0 0.0
        %289 = vmatprep.subr.mxu0 0.0
        %290 = vmatpush2.msra.mxu0 0.0
        %291 = vmatprep.subr.mxu0 0.0
        %292 = vmatpush2.msra.mxu0 0.0
        %293 = vmatprep.subr.mxu0 0.0
        %294 = vmatpush2.msra.mxu0 0.0
        %295 = vmatprep.subr.mxu0 0.0
        %296 = vmatpush2.msra.mxu0 0.0
        %297 = vmatprep.subr.mxu0 0.0
        %298 = vmatpush2.msra.mxu0 0.0
        %299 = vmatprep.subr.mxu0 0.0
        %300 = vmatpush2.msra.mxu0 0.0
        %301 = vmatprep.subr.mxu0 0.0
        %302 = vmatpush2.msra.mxu0 0.0
        %303 = vmatprep.subr.mxu0 0.0
        %304 = vmatpush2.msra.mxu0 0.0
        %305 = vmatprep.subr.mxu0 0.0
        %306 = vmatpush2.msra.mxu0 0.0
        %307 = vmatprep.subr.mxu0 0.0
        %308 = vmatpush2.msra.mxu0 0.0
        %309 = vmatprep.subr.mxu0 0.0
        %310 = vmatpush2.msra.mxu0 0.0
        %311 = vmatprep.subr.mxu0 0.0
        %312 = vmatpush2.msra.mxu0 0.0
        %313 = vmatprep.subr.mxu0 0.0
        %314 = vmatpush2.msra.mxu0 0.0
        %315 = vmatprep.subr.mxu0 0.0
        %316 = vmatpush2.msra.mxu0 0.0
        %317 = vmatprep.subr.mxu0 0.0
        %318 = vmatpush2.msra.mxu0 0.0
        %319 = vmatprep.mubr.f32.mxu0 0.0
        %320 = vmatmul.mubr.f32.gmra.mxu0 %v251
        %v321 = vpop.f32.mrf.mxu0
        %v322 = vadd.f32 %v247, %v321
        %v323 = vpop.f32.mrf.mxu0
        %324 = vdwg.mxu0
        %s325 = scalar_lea.vmem %s1, 16
        %v326 = vld [vmem:[%s325] sm:$0xff]
        %327 = vrot.lane.b32.xlu0 %v166, 124
        %v328 = vpop.permute.xlu0 %327
        %v330 = vsel %vm173, %v326, 0
        %v332 = vsel %vm177, %v328, 0
        %334 = vmatprep.subr.mxu0 0.0
        %335 = vmatpush1.msra.mxu0 0.0
        %336 = vmatprep.subr.mxu0 0.0
        %337 = vmatpush1.msra.mxu0 0.0
        %338 = vmatprep.subr.mxu0 0.0
        %339 = vmatpush1.msra.mxu0 0.0
        %340 = vmatprep.subr.mxu0 0.0
        %341 = vmatpush1.msra.mxu0 0.0
        %342 = vmatprep.subr.mxu0 0.0
        %343 = vmatpush1.msra.mxu0 0.0
        %344 = vmatprep.subr.mxu0 0.0
        %345 = vmatpush1.msra.mxu0 0.0
        %346 = vmatprep.subr.mxu0 0.0
        %347 = vmatpush1.msra.mxu0 0.0
        %348 = vmatprep.subr.mxu0 0.0
        %349 = vmatpush1.msra.mxu0 0.0
        %350 = vmatprep.subr.mxu0 0.0
        %351 = vmatpush1.msra.mxu0 0.0
        %352 = vmatprep.subr.mxu0 0.0
        %353 = vmatpush1.msra.mxu0 0.0
        %354 = vmatprep.subr.mxu0 0.0
        %355 = vmatpush1.msra.mxu0 0.0
        %356 = vmatprep.subr.mxu0 0.0
        %357 = vmatpush1.msra.mxu0 0.0
        %358 = vmatprep.subr.mxu0 0.0
        %359 = vmatpush1.msra.mxu0 0.0
        %360 = vmatprep.subr.mxu0 0.0
        %361 = vmatpush1.msra.mxu0 0.0
        %362 = vmatprep.subr.mxu0 0.0
        %363 = vmatpush1.msra.mxu0 0.0
        %364 = vmatprep.subr.mxu0 0.0
        %365 = vmatpush1.msra.mxu0 %v332
        %366 = vmatprep.subr.mxu0 0.0
        %367 = vmatpush2.msra.mxu0 0.0
        %368 = vmatprep.subr.mxu0 0.0
        %369 = vmatpush2.msra.mxu0 0.0
        %370 = vmatprep.subr.mxu0 0.0
        %371 = vmatpush2.msra.mxu0 0.0
        %372 = vmatprep.subr.mxu0 0.0
        %373 = vmatpush2.msra.mxu0 0.0
        %374 = vmatprep.subr.mxu0 0.0
        %375 = vmatpush2.msra.mxu0 0.0
        %376 = vmatprep.subr.mxu0 0.0
        %377 = vmatpush2.msra.mxu0 0.0
        %378 = vmatprep.subr.mxu0 0.0
        %379 = vmatpush2.msra.mxu0 0.0
        %380 = vmatprep.subr.mxu0 0.0
        %381 = vmatpush2.msra.mxu0 0.0
        %382 = vmatprep.subr.mxu0 0.0
        %383 = vmatpush2.msra.mxu0 0.0
        %384 = vmatprep.subr.mxu0 0.0
        %385 = vmatpush2.msra.mxu0 0.0
        %386 = vmatprep.subr.mxu0 0.0
        %387 = vmatpush2.msra.mxu0 0.0
        %388 = vmatprep.subr.mxu0 0.0
        %389 = vmatpush2.msra.mxu0 0.0
        %390 = vmatprep.subr.mxu0 0.0
        %391 = vmatpush2.msra.mxu0 0.0
        %392 = vmatprep.subr.mxu0 0.0
        %393 = vmatpush2.msra.mxu0 0.0
        %394 = vmatprep.subr.mxu0 0.0
        %395 = vmatpush2.msra.mxu0 0.0
        %396 = vmatprep.subr.mxu0 0.0
        %397 = vmatpush2.msra.mxu0 0.0
        %398 = vmatprep.mubr.f32.mxu0 0.0
        %399 = vmatmul.mubr.f32.gmra.mxu0 %v330
        %v400 = vpop.f32.mrf.mxu0
        %v401 = vadd.f32 0.0, %v400
        %v402 = vpop.f32.mrf.mxu0
        %403 = vdwg.mxu0
        %v404 = vadd.f32 %v322, %v401
        %v405 = vld [vmem:[%s2] sm:$0xff]
        %407 = vset.pattern.permute.xlu0 0
        %408 = vperm.xlu0 %407, %v405
        %v409 = vpop.permute.xlu0 %408
        %v411 = vadd.f32 %v404, %v409
        %v412 = vmax.f32 %v411, 0.0
        %413 = vst.msk [vmem:[%s161] sm:$0xff] %vm173, 0.0
        %415 = vrot.lane.b32.xlu0 %v412, 4
        %v416 = vpop.permute.xlu0 %415
        %vm418 = vcmask 162848
        %419 = vst.msk [vmem:[%s161] sm:$0xff] %vm418, %v416
        %s420 = sand.u32 %s93, 1
        %s421 = scalar_lea.sflag [#allocation3], %s420
        %s422 = sand.u32 %s93, 1
        %s423 = smul.addr %s422, 8
        %s424 = scalar_lea.vmem [#allocation2], %s423
        // Predicated region
        $region33: #{tpu_custom_call.1} parent=31 // pred_check
          %p425 = pneg %p103
        $region34: #{tpu_custom_call.1} parent=31 // pred_check_branch
          %427 = sbr.rel (%p425) target = $region36
        $region35: #{tpu_custom_call.1} parent=31 // pred_region
          %s429 = ssub.s32 128, 128
          %430 = vsyncadd %s421, %s429
          %s431 = smul.addr %s17, 128
          %s432 = scalar_lea.hbm %s3, %s431
          %s434 = sshll.u32 %s424, 4
          %s435 = int_to_ptr.vmem [resolvable:$true] %s434
          %437 = dma.vmem_to_hbm [thread:$0]  %s435, 128, %s432, %s421
        $region36: #{tpu_custom_call.1} parent=31 // pred_fallthru
          _
      $region32: #{tpu_custom_call.1} parent=5 // pred_fallthru
        _
      %p438 = scmp.le.s32.totalorder 2, %s12
      // Predicated region
      $region37: #{tpu_custom_call.1} parent=5 // pred_check
        %p439 = pneg %p438
      $region38: #{tpu_custom_call.1} parent=5 // pred_check_branch
        %441 = sbr.rel (%p439) target = $region40
      $region39: #{tpu_custom_call.1} parent=5 // pred_region
        %s442 = ssub.s32 %s12, 2
        // Predicated region
        $region41: #{tpu_custom_call.1} parent=39 // pred_check
          %p443 = pneg %p109
        $region42: #{tpu_custom_call.1} parent=39 // pred_check_branch
          %445 = sbr.rel (%p443) target = $region44
        $region43: #{tpu_custom_call.1} parent=39 // pred_region
          %s446 = sand.u32 %s94, 1
          %s447 = scalar_lea.sflag [#allocation3], %s446
          %s448 = sand.u32 %s94, 1
          %s449 = smul.addr %s448, 8
          %s450 = scalar_lea.vmem [#allocation2], %s449
          %451 = dma.done %s447, 128
        $region44: #{tpu_custom_call.1} parent=39 // pred_fallthru
          _
      $region40: #{tpu_custom_call.1} parent=5 // pred_fallthru
        _
    $region6: #{tpu_custom_call.1} parent=1 // loop_footer
      %s16 = sadd.s32 1, %s12
    $region7: #{tpu_custom_call.1} parent=1 // loop_footer_branch
      %11 = sbr.rel target = $region3
    $region8: #{tpu_custom_call.1} parent=1 // loop_exit
      _
    %452 = vsyncpa [#allocation3], 1
    %s453 = scalar_lea.sflag [#allocation3], 1
    %454 = vsyncpa %s453, 1

</llo_original>
